<compile_context>
chip_gen: v5e
topology: v5e:2x2
jax: 0.10.0
libtpu: 0.0.40
codegen_flags: <defaults>
</compile_context>

<pallas_src>
import jax
import jax.numpy as jnp
from jax import lax
from jax.experimental import pallas as pl
from jax.experimental.pallas import tpu as pltpu


def _round_up(x, m):
    return ((x + m - 1) // m) * m


def _vmem_bytes(shape, dtype):
    """Conservative VMEM footprint of a tile (last two dims padded to (8,128))."""
    dims = list(shape)
    if len(dims) >= 2:
        dims[-1] = _round_up(dims[-1], 128)
        dims[-2] = _round_up(dims[-2], 8)
    n = 1
    for d in dims:
        n *= int(d)
    return n * jnp.dtype(dtype).itemsize


def _bf16_native():
    """bf16 table by default only on chips with bf16-native VPU/MXU (v6e/v7x)."""
    try:
        kind = jax.devices()[0].device_kind.lower().replace(" ", "")
    except Exception:
        return False
    return ("v6" in kind) or ("v7" in kind) or ("tpu7" in kind)


def _lookup_kernel(ids_ref, table_ref, out_ref):
    # ids_ref:   (TM, P)    int32 -- P token ids packed per output row
    # table_ref: (P*V, TN)        -- fused (resize + bias folded) table slice;
    #                                block-diagonal replicated when P > 1
    # out_ref:   (TM, TN)
    ids = ids_ref[...]
    tm, p = ids.shape
    pv = table_ref.shape[0]
    v = pv // p
    cols = lax.broadcasted_iota(jnp.int32, (tm, pv), 1)
    hot = cols == ids[:, 0:1]
    for j in range(1, p):                       # p is a trace-time constant
        hot = hot | (cols == ids[:, j:j + 1] + j * v)
    # One-hot gather on the MXU (0/1 exact in any dtype); accumulate in f32.
    emb = jnp.dot(hot.astype(table_ref.dtype), table_ref[...],
                  preferred_element_type=jnp.float32)
    out_ref[...] = emb.astype(out_ref.dtype)


def dialog_dict_embedding(w_id, table, resize_w=None, resize_b=None, *,
                          tm=None, table_dtype="auto", out_dtype=jnp.float32):
    """Pallas TPU forward of DialogDictEmbedding.

    w_id:        [B, S] int token ids.
    table:       [V, word_d] f32 word_embed weight.
    resize_w:    [word_d, d_model] f32 (transposed nn.Linear weight) or None.
    resize_b:    [d_model] f32 or None.
    tm:          token tile (auto-sized if None).
    table_dtype: dtype of the in-kernel fused table; "auto" = bf16 on v6e/v7x,
                 f32 otherwise.  Accumulation is always f32.
    """
    B, S = w_id.shape
    V, word_d = table.shape

    # ---- Fold the resize Linear (and its bias) into the table once. --------
    if resize_w is not None:
        d_out = resize_w.shape[1]
        fused = jnp.dot(table, resize_w, preferred_element_type=jnp.float32)
        if resize_b is not None:
            # Every one-hot row sums to exactly 1 -> folding the bias into each
            # table row is exact; removes the bias DMA + per-tile broadcast add.
            fused = fused + resize_b.reshape(1, d_out).astype(jnp.float32)
    else:
        d_out = word_d
        fused = table.astype(jnp.float32)

    if table_dtype == "auto":
        table_dtype = jnp.bfloat16 if _bf16_native() else jnp.float32
    fused = fused.astype(table_dtype)

    N = B * S
    ids_flat = w_id.reshape(N).astype(jnp.int32)

    # ---- Lane-dense packing for narrow d_out (resize=False, word_d < 128). --
    # Pack p tokens per 128-lane output row using a block-diagonal (p*V, 128)
    # table.  Flattened memory layout is unchanged -> final reshape is free.
    p = 1
    d_k = d_out
    if d_out < 128 and 128 % d_out == 0:
        cand = 128 // d_out
        packed_bytes = cand * cand * V * d_out * jnp.dtype(table_dtype).itemsize
        if N % cand == 0 and packed_bytes <= (16 << 20):
            p = cand
            d_k = 128
            blocks = []
            for j in range(p):
                row = [jnp.zeros((V, d_out), table_dtype)] * p
                row[j] = fused
                blocks.append(jnp.concatenate(row, axis=1))
            fused = jnp.concatenate(blocks, axis=0)          # (p*V, 128)
    n_rows = N // p
    ids2d = ids_flat.reshape(n_rows, p)
    pv = p * V

    # ---- Tiling. -------------------------------------------------------------
    if tm is None:
        tm = 2048 if (d_k <= 256 and jnp.dtype(out_dtype) == jnp.bfloat16) else 1024
    unit = 8 * p
    tm = _round_up(min(tm, _round_up(N, unit)), unit)        # tokens per step
    tm_p = tm // p                                           # output rows / step

    if d_k <= 512 or d_k % 128 != 0:
        tn = d_k
    elif d_k % 512 == 0:
        tn = 512
    elif d_k % 256 == 0:
        tn = 256
    else:
        tn = 128
    d_tiles = pl.cdiv(d_k, tn)
    i_tiles = pl.cdiv(n_rows, tm_p)

    tb = jnp.dtype(table_dtype).itemsize
    ob = jnp.dtype(out_dtype).itemsize
    cost = pl.CostEstimate(
        flops=2 * n_rows * pv * d_k,
        transcendentals=0,
        bytes_accessed=(d_tiles * n_rows * p * 4      # ids (re-read per d tile)
                        + pv * d_k * tb               # table streamed once
                        + n_rows * d_k * ob),         # output writeback
    )
    vmem_need = (
        2 * _vmem_bytes((tm_p, p), jnp.int32)         # ids, double-buffered
        + 2 * _vmem_bytes((pv, tn), table_dtype)      # table slice, dbl-buffered
        + 2 * _vmem_bytes((tm_p, tn), out_dtype)      # output, double-buffered
        + _vmem_bytes((tm_p, pv), table_dtype)        # one-hot matmul operand
        + _vmem_bytes((tm_p, pv), jnp.int32)          # iota / compare temps
        + _vmem_bytes((tm_p, tn), jnp.float32)        # f32 accumulator
    )
    vmem_limit = int(min(max(2 * vmem_need, 8 << 20), 32 << 20))

    out = pl.pallas_call(
        _lookup_kernel,
        out_shape=jax.ShapeDtypeStruct((n_rows, d_k), out_dtype),
        grid_spec=pltpu.PrefetchScalarGridSpec(
            num_scalar_prefetch=0,
            grid=(d_tiles, i_tiles),                  # d_out outer, tokens inner
            in_specs=[
                pl.BlockSpec((tm_p, p), lambda j, i: (i, 0)),   # token ids
                pl.BlockSpec((pv, tn), lambda j, i: (0, j)),    # fused table slice
            ],
            out_specs=pl.BlockSpec((tm_p, tn), lambda j, i: (i, j)),
        ),
        compiler_params=pltpu.CompilerParams(
            dimension_semantics=("parallel", "parallel"),
            vmem_limit_bytes=vmem_limit,
        ),
        cost_estimate=cost,
    )(ids2d, fused)

    # (n_rows, d_k) row-major is bit-identical memory to (N, d_out) row-major.
    return out.reshape(B, S, d_out)


if __name__ == "__main__":
    # Small, deterministic shapes consistent with the module's forward.
    B, S = 2, 8                 # batch, sequence
    V = 32                      # vocab size of word_embed
    word_d = 64                 # word_embed.d_model
    d_model = 128               # encoder d_model (resize target; lane-dense)

    key = jax.random.PRNGKey(0)
    k_ids, k_tab, k_w, k_b = jax.random.split(key, 4)

    w_id = jax.random.randint(k_ids, (B, S), 0, V, dtype=jnp.int32)
    table = jax.random.normal(k_tab, (V, word_d), dtype=jnp.float32)
    lim = 1.0 / (word_d ** 0.5)
    resize_w = jax.random.uniform(k_w, (word_d, d_model), jnp.float32, -lim, lim)
    resize_b = jax.random.uniform(k_b, (d_model,), jnp.float32, -lim, lim)

    ref = jnp.take(table, w_id, axis=0) @ resize_w + resize_b
    ref_nr = jnp.take(table, w_id, axis=0)

    # Strict f32 resize path.
    out = jax.block_until_ready(
        dialog_dict_embedding(w_id, table, resize_w, resize_b,
                              table_dtype=jnp.float32))
    assert out.shape == (B, S, d_model), out.shape
    assert jnp.allclose(out, ref, atol=1e-4, rtol=1e-4), "resize path mismatch"

    # Strict f32 resize=False path (exercises the lane-dense token packing).
    out_nr = jax.block_until_ready(
        dialog_dict_embedding(w_id, table, table_dtype=jnp.float32))
    assert out_nr.shape == (B, S, word_d), out_nr.shape
    assert jnp.allclose(out_nr, ref_nr, atol=1e-4, rtol=1e-4), "no-resize mismatch"

    # Auto table dtype (bf16 on v6e/v7x, f32 otherwise).
    out_auto = jax.block_until_ready(
        dialog_dict_embedding(w_id, table, resize_w, resize_b))
    assert out_auto.shape == (B, S, d_model)
    assert jnp.allclose(out_auto, ref, atol=5e-2, rtol=5e-2), "auto path mismatch"

    # Explicit bf16 fast path (bf16 fused table + bf16 output).
    out_bf16 = jax.block_until_ready(
        dialog_dict_embedding(w_id, table, resize_w, resize_b,
                              table_dtype=jnp.bfloat16, out_dtype=jnp.bfloat16))
    assert out_bf16.shape == (B, S, d_model)
    assert out_bf16.dtype == jnp.bfloat16
    assert jnp.allclose(out_bf16.astype(jnp.float32), ref,
                        atol=5e-2, rtol=5e-2), "bf16 path mismatch"

    print("KERNEL_OK")
</pallas_src>

<mosaic_0001>
module attributes {stable_mosaic.version = 11 : i64} {
  func.func @_lookup_kernel(%arg0: i32, %arg1: i32, %arg2: memref<16x1xi32, #tpu.memory_space<vmem>>, %arg3: memref<32x128xf32, #tpu.memory_space<vmem>>, %arg4: memref<16x128xf32, #tpu.memory_space<vmem>>) attributes {dimension_semantics = [#tpu.dimension_semantics<parallel>, #tpu.dimension_semantics<parallel>], iteration_bounds = array<i64: 1, 1>, scalar_prefetch = 0 : i64, scratch_operands = 0 : i64, tpu.core_type = #tpu.core_type<tc>, window_params = [{transform_indices = @transform_0, window_bounds = array<i64: 16, 1>}, {transform_indices = @transform_1, window_bounds = array<i64: 32, 128>}, {transform_indices = @transform_2, window_bounds = array<i64: 16, 128>}]} {
    %c0 = arith.constant 0 : index
    %c0_0 = arith.constant 0 : index
    %0 = vector.load %arg2[%c0, %c0_0] : memref<16x1xi32, #tpu.memory_space<vmem>>, vector<16x1xi32>
    %1 = tpu.iota {dimensions = array<i32: 1>} : vector<16x32xi32>
    %2 = vector.broadcast %0 : vector<16x1xi32> to vector<16x32xi32>
    %3 = arith.cmpi eq, %1, %2 : vector<16x32xi32>
    %4 = arith.extui %3 : vector<16x32xi1> to vector<16x32xi32>
    %5 = arith.sitofp %4 : vector<16x32xi32> to vector<16x32xf32>
    %c0_1 = arith.constant 0 : index
    %c0_2 = arith.constant 0 : index
    %6 = vector.load %arg3[%c0_1, %c0_2] : memref<32x128xf32, #tpu.memory_space<vmem>>, vector<32x128xf32>
    %cst = arith.constant dense<0.000000e+00> : vector<16x128xf32>
    %7 = tpu.matmul %5, %6, %cst {dimension_numbers = #tpu.dot_dimension_numbers<[1], [0], [0], [1], [0, 0, 1, 1], [], []>} : vector<16x32xf32>, vector<32x128xf32>, vector<16x128xf32> -> vector<16x128xf32>
    %c0_3 = arith.constant 0 : index
    %c0_4 = arith.constant 0 : index
    %8 = vector.load %arg4[%c0_3, %c0_4] : memref<16x128xf32, #tpu.memory_space<vmem>>, vector<16x128xf32>
    tpu.vector_store %arg4[%c0_3, %c0_4], %7 {strides = array<i32>} : memref<16x128xf32, #tpu.memory_space<vmem>>, vector<16x128xf32>,
    return
  }
  func.func @transform_0(%arg0: i32, %arg1: i32) -> (i32, i32) {
    %c0_i32 = arith.constant 0 : i32
    %c0_i32_0 = arith.constant 0 : i32
    return %arg1, %c0_i32 : i32, i32
  }
  func.func @transform_1(%arg0: i32, %arg1: i32) -> (i32, i32) {
    %c0_i32 = arith.constant 0 : i32
    %c0_i32_0 = arith.constant 0 : i32
    return %c0_i32, %arg0 : i32, i32
  }
  func.func @transform_2(%arg0: i32, %arg1: i32) -> (i32, i32) {
    %c0_i32 = arith.constant 0 : i32
    return %arg1, %arg0 : i32, i32
  }
}

</mosaic_0001>

<llo_original>
// kernel: tpu_custom_call.1
$region0: #{tpu_custom_call.1}
  #allocation0 [shape = 'u32[]', space=smem, size = 0x4, offset = 0x4, fixed_abs, tag = 'smem constant byte address 0x4 - core index']
  #allocation1 [shape = 'u32[72,128]{1,0:T(1,128)}', space=vmem, size = 0x9000, scoped, tag = 'internal scratch']
  %s0 = inlined_call_operand.vmem [shape: s32[16,1], index: 0, kind: input, shape index: {}]
  %s1 = inlined_call_operand.hbm [shape: f32[32,128], index: 1, kind: input, shape index: {}]
  %s2 = inlined_call_operand.hbm [shape: f32[16,128], index: 2, kind: output, shape index: {}]
  %s3 = sld [smem:[#allocation0]]
  $region22: #{tpu_custom_call.1} parent=0
    _
  %s5 = ssub.s32 1, %s3
  %s6 = scalar_select 0, %s5, %s3
  $region1: #{tpu_custom_call.1} parent=0
    #allocation2 [shape = 'u8[16384]{0}', space=vmem, size = 0x4000, scoped, tag = 'input window, operand 1, single buffered']
    #allocation3 [shape = 's32[1]{0}', space=sflag, size = 0x4, scoped, tag = 'scoped memory for tpu_custom_call.1']
    #allocation4 [shape = 's32[1]{0}', space=sflag, size = 0x4, scoped, tag = 'scoped memory for tpu_custom_call.1']
    #allocation5 [shape = 'u8[8192]{0}', space=vmem, size = 0x2000, scoped, tag = 'output window, operand 0, single buffered']
    %7 = vsyncpa [#allocation3], 0
    %8 = vsyncpa [#allocation4], 0
    // Predicated region
    $region2: #{tpu_custom_call.1} parent=1 // pred_check
      _
    $region3: #{tpu_custom_call.1} parent=1 // pred_check_branch
      %10 = sbr.rel (0) target = $region5
    $region4: #{tpu_custom_call.1} parent=1 // pred_region
      _
    $region5: #{tpu_custom_call.1} parent=1 // pred_fallthru
      _
    // Predicated region
    $region6: #{tpu_custom_call.1} parent=1 // pred_check
      _
    $region7: #{tpu_custom_call.1} parent=1 // pred_check_branch
      %12 = sbr.rel (0) target = $region9
    $region8: #{tpu_custom_call.1} parent=1 // pred_region
      %14 = vsyncadd [#allocation3], 0
      %s15 = sshll.u32 %s1, 4
      %s16 = int_to_ptr.hbm [resolvable:$true] %s15
      %s17 = sshll.u32 [#allocation2], 4
      %s18 = int_to_ptr.vmem [resolvable:$true] %s17
      %23 = dma.hbm_to_vmem [thread:$0]  %s16, 512, %s18, [#allocation3], 128, 128, 8
    $region9: #{tpu_custom_call.1} parent=1 // pred_fallthru
      _
    // Predicated region
    $region10: #{tpu_custom_call.1} parent=1 // pred_check
      _
    $region11: #{tpu_custom_call.1} parent=1 // pred_check_branch
      %25 = sbr.rel (0) target = $region13
    $region12: #{tpu_custom_call.1} parent=1 // pred_region
      %27 = dma.done [#allocation3], 512
    $region13: #{tpu_custom_call.1} parent=1 // pred_fallthru
      _
    %v28 = vld [vmem:[%s0] sm:$0xff]
    %v29 = vld [vmem:[%s0 + $0x8] sm:$0xff]
    %v30 = vlaneseq
    %v31 = vand.u32 %v30, 127
    %32 = vset.pattern.permute.xlu0 0
    %33 = vperm.xlu0 %32, %v28
    %v34 = vpop.permute.xlu0 %33
    %35 = vset.pattern.permute.xlu0 0
    %36 = vperm.xlu0 %35, %v29
    %v37 = vpop.permute.xlu0 %36
    %vm38 = vcmp.eq.s32.totalorder %v31, %v34
    %vm39 = vcmp.eq.s32.totalorder %v31, %v37
    %v40 = vsel %vm38, 1, 0
    %v41 = vsel %vm39, 1, 0
    %v42 = vcvt.s32.f32 %v40
    %v43 = vcvt.s32.f32 %v41
    %v44 = vld [vmem:[#allocation2] sm:$0xff]
    %v45 = vld [vmem:[#allocation2 + $0x8] sm:$0xff]
    %v46 = vld [vmem:[#allocation2 + $0x10] sm:$0xff]
    %v47 = vld [vmem:[#allocation2 + $0x18] sm:$0xff]
    %vm48 = vcmask 261120
    %v50 = vsel %vm48, %v42, 0
    %v53 = vsel %vm48, %v43, 0
    %55 = vmatpush.msra.mxu0 0.0
    %56 = vmatpush.msra.mxu0 0.0
    %57 = vmatpush.msra.mxu0 0.0
    %58 = vmatpush.msra.mxu0 0.0
    %59 = vmatpush.msra.mxu0 0.0
    %60 = vmatpush.msra.mxu0 0.0
    %61 = vmatpush.msra.mxu0 0.0
    %62 = vmatpush.msra.mxu0 0.0
    %63 = vmatpush.msra.mxu0 0.0
    %64 = vmatpush.msra.mxu0 0.0
    %65 = vmatpush.msra.mxu0 0.0
    %66 = vmatpush.msra.mxu0 0.0
    %67 = vmatpush.msra.mxu0 %v47
    %68 = vmatpush.msra.mxu0 %v46
    %69 = vmatpush.msra.mxu0 %v45
    %70 = vmatpush.msra.mxu0 %v44
    %71 = vmatmul.f32.gmra.mxu0 %v50
    %v72 = vpop.f32.mrf.mxu0
    %v73 = vadd.f32 0.0, %v72
    %74 = vmatmul.f32.gmra.mxu0 %v53
    %v75 = vpop.f32.mrf.mxu0
    %v76 = vadd.f32 0.0, %v75
    %77 = vdwg.mxu0
    %78 = vst [vmem:[#allocation5] sm:$0xff] %v73
    %79 = vst [vmem:[#allocation5 + $0x8] sm:$0xff] %v76
    // Predicated region
    $region14: #{tpu_custom_call.1} parent=1 // pred_check
      _
    $region15: #{tpu_custom_call.1} parent=1 // pred_check_branch
      %81 = sbr.rel (0) target = $region17
    $region16: #{tpu_custom_call.1} parent=1 // pred_region
      %83 = vsyncadd [#allocation4], 0
      %s84 = sshll.u32 [#allocation5], 4
      %s85 = int_to_ptr.vmem [resolvable:$true] %s84
      %s86 = sshll.u32 %s2, 4
      %s87 = int_to_ptr.hbm [resolvable:$true] %s86
      %92 = dma.vmem_to_hbm [thread:$0]  %s85, 256, %s87, [#allocation4], 128, 128, 8
    $region17: #{tpu_custom_call.1} parent=1 // pred_fallthru
      _
    // Predicated region
    $region18: #{tpu_custom_call.1} parent=1 // pred_check
      _
    $region19: #{tpu_custom_call.1} parent=1 // pred_check_branch
      %94 = sbr.rel (0) target = $region21
    $region20: #{tpu_custom_call.1} parent=1 // pred_region
      %96 = dma.done [#allocation4], 256
    $region21: #{tpu_custom_call.1} parent=1 // pred_fallthru
      _
    %97 = vsyncpa [#allocation3], 1
    %98 = vsyncpa [#allocation4], 1

</llo_original>
